<compile_context>
chip_gen: v6e
topology: v6e:2x2x1
jax: 0.10.0
libtpu: 0.0.40
codegen_flags: <defaults>
</compile_context>

<pallas_src>
import math

import jax
import jax.numpy as jnp
from jax.experimental import pallas as pl
from jax.experimental.pallas import tpu as pltpu


IN_FEATURES = 6
HIDDEN = 30
N_LAYERS = 6
PAD = 32      # padded hidden width (30 -> 32); row 31 carries the "ones" lane
XROWS = 8     # augmented input rows: 6 features + ones row + zero row


def _make_kernel(n_chains):
    """Fused 6-layer MLP forward for one [XROWS, tb] batch tile.

    Activations are transposed (batch on the lane axis).  All biases are folded
    into the matmuls via the constant ones row, so every layer is one bf16 MXU
    dot with f32 accumulation; ReLU is applied in f32 and re-cast to bf16 just
    before the next dot.  The tile is split into `n_chains` independent column
    chains (each a multiple of 128 lanes) unrolled together so the scheduler can
    fill MXU push/drain gaps between the tiny serial matmuls.
    """
    def kernel(x_ref, w1_ref, wp_ref, o_ref):
        tb = x_ref.shape[1]
        cw = tb // n_chains
        w1 = w1_ref[...]                                        # [PAD, XROWS] bf16
        hs = []
        for c in range(n_chains):
            xc = x_ref[:, c * cw:(c + 1) * cw].astype(jnp.bfloat16)
            hs.append(jnp.dot(w1, xc, preferred_element_type=jnp.float32))
        for l in range(N_LAYERS - 1):                           # layers 2..6
            w = wp_ref[l]                                       # [PAD, PAD] bf16
            hs = [jnp.maximum(h, 0.0).astype(jnp.bfloat16) for h in hs]
            hs = [jnp.dot(w, h, preferred_element_type=jnp.float32) for h in hs]
        for c in range(n_chains):
            # Row 0 of the last layer is the model output; lane-dense store.
            o_ref[:, c * cw:(c + 1) * cw] = hs[c][0:1, :]
    return kernel


def _round_up(n, m):
    return ((n + m - 1) // m) * m


def pack_params(params):
    """Pack PyTorch-layout (W[out,in], b[out]) params into two bf16 blocks.

    w1p: [PAD, XROWS]          layer 1; W1 in [:30,:6], b1 in column 6 (the
                               ones row of the augmented input), 1.0 at [31,6]
                               seeds the ones row of h1.
    wp:  [N_LAYERS-1, PAD, PAD] layers 2..6; W_l in [:out,:30], b_l in column
                               31, 1.0 at [31,31] propagates the ones row.
    All padding is zero, so padded rows/columns stay exactly zero through every
    layer (and padded batch columns, whose ones row is 0, never pick up a bias).
    """
    w1, b1 = params[0]
    w1p = jnp.zeros((PAD, XROWS), jnp.float32)
    w1p = w1p.at[:w1.shape[0], :w1.shape[1]].set(w1)
    w1p = w1p.at[:b1.shape[0], IN_FEATURES].set(b1)
    w1p = w1p.at[PAD - 1, IN_FEATURES].set(1.0)

    wp = jnp.zeros((N_LAYERS - 1, PAD, PAD), jnp.float32)
    for l, (w, b) in enumerate(params[1:]):
        wp = wp.at[l, :w.shape[0], :w.shape[1]].set(w)
        wp = wp.at[l, :b.shape[0], PAD - 1].set(b)
        wp = wp.at[l, PAD - 1, PAD - 1].set(1.0)
    return w1p.astype(jnp.bfloat16), wp.astype(jnp.bfloat16)


def track_analysis_forward(x, packed, tile_b=4096):
    """x: [B, 6] float32. packed: output of pack_params. Returns [B, 1] f32."""
    w1p, wp = packed
    B, F = x.shape
    assert F == IN_FEATURES, "feature dim mismatch"

    # Batch on the lane axis, 128-lane granularity (lane width is 128 on all
    # generations).  Large default tile amortizes per-grid-step overhead and
    # per-tile MXU weight re-push; live VMEM stays ~1-2 MB even at 8192.
    tb = min(tile_b, _round_up(B, 128))
    if B > 128:
        # Guarantee >= 2 grid steps so v7x's two TensorCores both get work.
        tb = min(tb, _round_up(pl.cdiv(B, 2), 128))
    b_pad = _round_up(B, tb)
    num_tiles = b_pad // tb
    # Two interleaved column chains whenever the half-tile stays 128-aligned.
    n_chains = 2 if tb % 256 == 0 else 1

    # Augmented, transposed input: rows 0:6 = features, row 6 = 1 (bias lane),
    # row 7 = 0.  Under jit the transpose/concat/pad fuse into a single copy.
    x_aug = jnp.concatenate(
        [x.T,
         jnp.ones((1, B), jnp.float32),
         jnp.zeros((1, B), jnp.float32)], axis=0)
    x_aug = jnp.pad(x_aug, ((0, 0), (0, b_pad - B)))            # [XROWS, b_pad]

    out = pl.pallas_call(
        _make_kernel(n_chains),
        out_shape=jax.ShapeDtypeStruct((1, b_pad), jnp.float32),
        grid=(num_tiles,),
        in_specs=[
            pl.BlockSpec((XROWS, tb), lambda i: (0, i)),
            # Constant index maps: weights DMA'd once, VMEM-resident for all tiles.
            pl.BlockSpec((PAD, XROWS), lambda i: (0, 0)),
            pl.BlockSpec((N_LAYERS - 1, PAD, PAD), lambda i: (0, 0, 0)),
        ],
        out_specs=pl.BlockSpec((1, tb), lambda i: (0, i)),
        compiler_params=pltpu.CompilerParams(
            dimension_semantics=("parallel",)),
    )(x_aug, w1p, wp)

    return out[0, :B].reshape(B, 1)


def init_params(key):
    """PyTorch nn.Linear default init: U[-1/sqrt(fan_in), 1/sqrt(fan_in)]."""
    dims = [(IN_FEATURES, HIDDEN)] + [(HIDDEN, HIDDEN)] * 4 + [(HIDDEN, 1)]
    params = []
    for fan_in, fan_out in dims:
        key, kw, kb = jax.random.split(key, 3)
        bound = 1.0 / math.sqrt(fan_in)
        w = jax.random.uniform(kw, (fan_out, fan_in), jnp.float32,
                               minval=-bound, maxval=bound)
        b = jax.random.uniform(kb, (fan_out,), jnp.float32,
                               minval=-bound, maxval=bound)
        params.append((w, b))
    return params


def reference_forward_f32(x, params):
    """Plain-JAX f32 reference (exact PyTorch semantics: x @ W.T + b)."""
    h = x
    for i, (w, b) in enumerate(params):
        h = h @ w.T + b
        if i < len(params) - 1:
            h = jnp.maximum(h, 0.0)
    return h


def reference_forward_bf16(x, params):
    """Mixed-precision reference matching the kernel (bf16 operands, f32 acc)."""
    h = x.astype(jnp.bfloat16)
    for i, (w, b) in enumerate(params):
        h = jnp.dot(h, w.astype(jnp.bfloat16).T,
                    preferred_element_type=jnp.float32)
        h = h + b.astype(jnp.bfloat16).astype(jnp.float32)
        if i < len(params) - 1:
            h = jnp.maximum(h, 0.0).astype(jnp.bfloat16)
    return h


if __name__ == "__main__":
    key = jax.random.PRNGKey(0)
    key, kp = jax.random.split(key)
    params = init_params(kp)
    packed = pack_params(params)

    fwd = jax.jit(lambda xx: track_analysis_forward(xx, packed))

    # B=8: single tile, single chain.  B=384: two tiles, two chains, padding.
    for B in (8, 384):
        key, kx = jax.random.split(key)
        x = jax.random.normal(kx, (B, IN_FEATURES), jnp.float32)

        out = jax.block_until_ready(fwd(x))
        assert out.shape == (B, 1), out.shape

        ref16 = reference_forward_bf16(x, params)
        ref32 = reference_forward_f32(x, params)
        assert jnp.allclose(out, ref16, atol=2e-3, rtol=2e-3), (
            "mixed-precision mismatch, max abs diff = "
            f"{float(jnp.max(jnp.abs(out - ref16)))}")
        assert jnp.allclose(out, ref32, atol=5e-2, rtol=5e-2), (
            "f32-reference mismatch, max abs diff = "
            f"{float(jnp.max(jnp.abs(out - ref32)))}")

    print("KERNEL_OK")
</pallas_src>

<mosaic_0001>
module attributes {stable_mosaic.version = 11 : i64} {
  func.func @kernel(%arg0: i32, %arg1: memref<8x128xf32, #tpu.memory_space<vmem>>, %arg2: memref<32x8xbf16, #tpu.memory_space<vmem>>, %arg3: memref<5x32x32xbf16, #tpu.memory_space<vmem>>, %arg4: memref<1x128xf32, #tpu.memory_space<vmem>>) attributes {dimension_semantics = [#tpu.dimension_semantics<parallel>], iteration_bounds = array<i64: 1>, scalar_prefetch = 0 : i64, scratch_operands = 0 : i64, tpu.core_type = #tpu.core_type<tc>, window_params = [{transform_indices = @transform_0, window_bounds = array<i64: 8, 128>}, {pipeline_mode = #tpu.pipeline_mode<synchronous>, transform_indices = @transform_1, window_bounds = array<i64: 32, 8>}, {pipeline_mode = #tpu.pipeline_mode<synchronous>, transform_indices = @transform_2, window_bounds = array<i64: 5, 32, 32>}, {transform_indices = @transform_3, window_bounds = array<i64: 1, 128>}]} {
    %c0 = arith.constant 0 : index
    %c0_0 = arith.constant 0 : index
    %0 = vector.load %arg2[%c0, %c0_0] : memref<32x8xbf16, #tpu.memory_space<vmem>>, vector<32x8xbf16>
    %c0_1 = arith.constant 0 : index
    %c0_2 = arith.constant 0 : index
    %1 = vector.load %arg1[%c0_1, %c0_2] : memref<8x128xf32, #tpu.memory_space<vmem>>, vector<8x128xf32>
    %2 = arith.truncf %1 : vector<8x128xf32> to vector<8x128xbf16>
    %cst = arith.constant dense<0.000000e+00> : vector<32x128xf32>
    %3 = tpu.matmul %0, %2, %cst {dimension_numbers = #tpu.dot_dimension_numbers<[1], [0], [0], [1], [0, 0, 1, 1], [], []>} : vector<32x8xbf16>, vector<8x128xbf16>, vector<32x128xf32> -> vector<32x128xf32>
    %c0_3 = arith.constant 0 : index
    %c0_4 = arith.constant 0 : index
    %c0_5 = arith.constant 0 : index
    %4 = vector.load %arg3[%c0_3, %c0_4, %c0_5] : memref<5x32x32xbf16, #tpu.memory_space<vmem>>, vector<1x32x32xbf16>
    %5 = vector.shape_cast %4 : vector<1x32x32xbf16> to vector<32x32xbf16>
    %cst_6 = arith.constant 0.000000e+00 : f32
    %6 = vector.broadcast %cst_6 : f32 to vector<32x128xf32>
    %7 = arith.maximumf %3, %6 : vector<32x128xf32>
    %8 = arith.truncf %7 : vector<32x128xf32> to vector<32x128xbf16>
    %cst_7 = arith.constant dense<0.000000e+00> : vector<32x128xf32>
    %9 = tpu.matmul %5, %8, %cst_7 {dimension_numbers = #tpu.dot_dimension_numbers<[1], [0], [0], [1], [0, 0, 1, 1], [], []>} : vector<32x32xbf16>, vector<32x128xbf16>, vector<32x128xf32> -> vector<32x128xf32>
    %c1 = arith.constant 1 : index
    %c0_8 = arith.constant 0 : index
    %c0_9 = arith.constant 0 : index
    %10 = vector.load %arg3[%c1, %c0_8, %c0_9] : memref<5x32x32xbf16, #tpu.memory_space<vmem>>, vector<1x32x32xbf16>
    %11 = vector.shape_cast %10 : vector<1x32x32xbf16> to vector<32x32xbf16>
    %cst_10 = arith.constant 0.000000e+00 : f32
    %12 = vector.broadcast %cst_10 : f32 to vector<32x128xf32>
    %13 = arith.maximumf %9, %12 : vector<32x128xf32>
    %14 = arith.truncf %13 : vector<32x128xf32> to vector<32x128xbf16>
    %cst_11 = arith.constant dense<0.000000e+00> : vector<32x128xf32>
    %15 = tpu.matmul %11, %14, %cst_11 {dimension_numbers = #tpu.dot_dimension_numbers<[1], [0], [0], [1], [0, 0, 1, 1], [], []>} : vector<32x32xbf16>, vector<32x128xbf16>, vector<32x128xf32> -> vector<32x128xf32>
    %c2 = arith.constant 2 : index
    %c0_12 = arith.constant 0 : index
    %c0_13 = arith.constant 0 : index
    %16 = vector.load %arg3[%c2, %c0_12, %c0_13] : memref<5x32x32xbf16, #tpu.memory_space<vmem>>, vector<1x32x32xbf16>
    %17 = vector.shape_cast %16 : vector<1x32x32xbf16> to vector<32x32xbf16>
    %cst_14 = arith.constant 0.000000e+00 : f32
    %18 = vector.broadcast %cst_14 : f32 to vector<32x128xf32>
    %19 = arith.maximumf %15, %18 : vector<32x128xf32>
    %20 = arith.truncf %19 : vector<32x128xf32> to vector<32x128xbf16>
    %cst_15 = arith.constant dense<0.000000e+00> : vector<32x128xf32>
    %21 = tpu.matmul %17, %20, %cst_15 {dimension_numbers = #tpu.dot_dimension_numbers<[1], [0], [0], [1], [0, 0, 1, 1], [], []>} : vector<32x32xbf16>, vector<32x128xbf16>, vector<32x128xf32> -> vector<32x128xf32>
    %c3 = arith.constant 3 : index
    %c0_16 = arith.constant 0 : index
    %c0_17 = arith.constant 0 : index
    %22 = vector.load %arg3[%c3, %c0_16, %c0_17] : memref<5x32x32xbf16, #tpu.memory_space<vmem>>, vector<1x32x32xbf16>
    %23 = vector.shape_cast %22 : vector<1x32x32xbf16> to vector<32x32xbf16>
    %cst_18 = arith.constant 0.000000e+00 : f32
    %24 = vector.broadcast %cst_18 : f32 to vector<32x128xf32>
    %25 = arith.maximumf %21, %24 : vector<32x128xf32>
    %26 = arith.truncf %25 : vector<32x128xf32> to vector<32x128xbf16>
    %cst_19 = arith.constant dense<0.000000e+00> : vector<32x128xf32>
    %27 = tpu.matmul %23, %26, %cst_19 {dimension_numbers = #tpu.dot_dimension_numbers<[1], [0], [0], [1], [0, 0, 1, 1], [], []>} : vector<32x32xbf16>, vector<32x128xbf16>, vector<32x128xf32> -> vector<32x128xf32>
    %c4 = arith.constant 4 : index
    %c0_20 = arith.constant 0 : index
    %c0_21 = arith.constant 0 : index
    %28 = vector.load %arg3[%c4, %c0_20, %c0_21] : memref<5x32x32xbf16, #tpu.memory_space<vmem>>, vector<1x32x32xbf16>
    %29 = vector.shape_cast %28 : vector<1x32x32xbf16> to vector<32x32xbf16>
    %cst_22 = arith.constant 0.000000e+00 : f32
    %30 = vector.broadcast %cst_22 : f32 to vector<32x128xf32>
    %31 = arith.maximumf %27, %30 : vector<32x128xf32>
    %32 = arith.truncf %31 : vector<32x128xf32> to vector<32x128xbf16>
    %cst_23 = arith.constant dense<0.000000e+00> : vector<32x128xf32>
    %33 = tpu.matmul %29, %32, %cst_23 {dimension_numbers = #tpu.dot_dimension_numbers<[1], [0], [0], [1], [0, 0, 1, 1], [], []>} : vector<32x32xbf16>, vector<32x128xbf16>, vector<32x128xf32> -> vector<32x128xf32>
    %34 = vector.extract_strided_slice %33 {offsets = [0, 0], sizes = [1, 128], strides = [1, 1]} : vector<32x128xf32> to vector<1x128xf32>
    %c0_24 = arith.constant 0 : index
    %c0_25 = arith.constant 0 : index
    %35 = vector.load %arg4[%c0_24, %c0_25] : memref<1x128xf32, #tpu.memory_space<vmem>>, vector<1x128xf32>
    tpu.vector_store %arg4[%c0_24, %c0_25], %34 {strides = array<i32>} : memref<1x128xf32, #tpu.memory_space<vmem>>, vector<1x128xf32>,
    return
  }
  func.func @transform_0(%arg0: i32) -> (i32, i32) {
    %c0_i32 = arith.constant 0 : i32
    %c0_i32_0 = arith.constant 0 : i32
    return %c0_i32, %arg0 : i32, i32
  }
  func.func @transform_1(%arg0: i32) -> (i32, i32) {
    %c0_i32 = arith.constant 0 : i32
    %c0_i32_0 = arith.constant 0 : i32
    %c0_i32_1 = arith.constant 0 : i32
    return %c0_i32, %c0_i32_0 : i32, i32
  }
  func.func @transform_2(%arg0: i32) -> (i32, i32, i32) {
    %c0_i32 = arith.constant 0 : i32
    %c0_i32_0 = arith.constant 0 : i32
    %c0_i32_1 = arith.constant 0 : i32
    %c0_i32_2 = arith.constant 0 : i32
    return %c0_i32, %c0_i32_0, %c0_i32_1 : i32, i32, i32
  }
  func.func @transform_3(%arg0: i32) -> (i32, i32) {
    %c0_i32 = arith.constant 0 : i32
    %c0_i32_0 = arith.constant 0 : i32
    return %c0_i32, %arg0 : i32, i32
  }
}

</mosaic_0001>

<llo_original>
// kernel: _lambda_.1
$region0: #{_lambda_.1}
  #allocation0 [shape = 'u32[]', space=smem, size = 0x4, offset = 0x4, fixed_abs, tag = 'smem constant byte address 0x4 - core index']
  #allocation1 [shape = 'u32[144,128]{1,0:T(1,128)}', space=vmem, size = 0x12000, scoped, tag = 'internal scratch']
  %s0 = inlined_call_operand.vmem [shape: f32[8,128], index: 0, kind: input, shape index: {}]
  %s1 = inlined_call_operand.vmem [shape: bf16[32,8], index: 1, kind: input, shape index: {}]
  %s2 = inlined_call_operand.hbm [shape: bf16[5,32,32], index: 2, kind: input, shape index: {}]
  %s3 = inlined_call_operand.vmem [shape: f32[1,128], index: 3, kind: output, shape index: {}]
  %s4 = sld [smem:[#allocation0]]
  $region26: #{_lambda_.1} parent=0
    _
  %s6 = ssub.s32 1, %s4
  %s7 = scalar_select 0, %s6, %s4
  $region1: #{_lambda_.1} parent=0
    #allocation2 [shape = 'u8[40960]{0}', space=vmem, size = 0xa000, scoped, tag = 'input window, operand 2, single buffered']
    #allocation3 [shape = 's32[1]{0}', space=sflag, size = 0x4, scoped, tag = 'scoped memory for _lambda_.1']
    %8 = vsyncpa [#allocation3], 0
    // Predicated region
    $region2: #{_lambda_.1} parent=1 // pred_check
      _
    $region3: #{_lambda_.1} parent=1 // pred_check_branch
      %10 = sbr.rel (0) target = $region5
    $region4: #{_lambda_.1} parent=1 // pred_region
      _
    $region5: #{_lambda_.1} parent=1 // pred_fallthru
      _
    // Predicated region
    $region6: #{_lambda_.1} parent=1 // pred_check
      _
    $region7: #{_lambda_.1} parent=1 // pred_check_branch
      %12 = sbr.rel (0) target = $region9
    $region8: #{_lambda_.1} parent=1 // pred_region
      _
    $region9: #{_lambda_.1} parent=1 // pred_fallthru
      _
    // Predicated region
    $region10: #{_lambda_.1} parent=1 // pred_check
      _
    $region11: #{_lambda_.1} parent=1 // pred_check_branch
      %14 = sbr.rel (0) target = $region13
    $region12: #{_lambda_.1} parent=1 // pred_region
      %s16 = ssub.s32 1280, 1280
      %17 = vsyncadd [#allocation3], %s16
      %s18 = sshll.u32 [#allocation2], 4
      %s19 = int_to_ptr.vmem [resolvable:$true] %s18
      %24 = dma.hbm_to_vmem [thread:$0]  %s2, 1280, %s19, [#allocation3], 64, 64, 4
    $region13: #{_lambda_.1} parent=1 // pred_fallthru
      _
    // Predicated region
    $region14: #{_lambda_.1} parent=1 // pred_check
      _
    $region15: #{_lambda_.1} parent=1 // pred_check_branch
      %26 = sbr.rel (0) target = $region17
    $region16: #{_lambda_.1} parent=1 // pred_region
      %27 = dma.done [#allocation3], 1280
    $region17: #{_lambda_.1} parent=1 // pred_fallthru
      _
    %v29 = vld [vmem:[%s1] sm:$0xf]
    %v30 = vld [vmem:[%s1 + $0x4] sm:$0xf]
    %v31 = vld [vmem:[%s1 + $0x8] sm:$0xf]
    %v32 = vld [vmem:[%s1 + $0xc] sm:$0xf]
    %v33 = vld [vmem:[%s0] sm:$0xff]
    %v34 = vpack.c.bf16 %v33, %v33
    %v39 = vunpack.c.l.b16 %v29
    %v40 = vunpack.c.l.b16 %v30
    %v41 = vunpack.c.l.b16 %v31
    %v42 = vunpack.c.l.b16 %v32
    %v43 = vpack.c.b16 %v40, %v39
    %v44 = vpack.c.b16 %v42, %v41
    %vm45 = vcmask 64512
    %v47 = vsel %vm45, %v43, 0
    %v50 = vsel %vm45, %v44, 0
    %vm52 = vcmask 1043456
    %v54 = vsel %vm52, %v34, 0
    %56 = vmatprep.subr.bf16.mxu0 0
    %57 = vmatpush1.bf16.msra.mxu0 0
    %58 = vmatprep.subr.bf16.mxu0 0
    %59 = vmatpush1.bf16.msra.mxu0 0
    %60 = vmatprep.subr.bf16.mxu0 0
    %61 = vmatpush1.bf16.msra.mxu0 0
    %62 = vmatprep.subr.bf16.mxu0 0
    %63 = vmatpush1.bf16.msra.mxu0 0
    %64 = vmatprep.subr.bf16.mxu0 0
    %65 = vmatpush1.bf16.msra.mxu0 0
    %66 = vmatprep.subr.bf16.mxu0 0
    %67 = vmatpush1.bf16.msra.mxu0 0
    %68 = vmatprep.subr.bf16.mxu0 0
    %69 = vmatpush1.bf16.msra.mxu0 0
    %70 = vmatprep.subr.bf16.mxu0 0
    %71 = vmatpush1.bf16.msra.mxu0 %v54
    %72 = vmatprep.subr.bf16.mxu0 0
    %73 = vmatpush2.bf16.msra.mxu0 0
    %74 = vmatprep.subr.bf16.mxu0 0
    %75 = vmatpush2.bf16.msra.mxu0 0
    %76 = vmatprep.subr.bf16.mxu0 0
    %77 = vmatpush2.bf16.msra.mxu0 0
    %78 = vmatprep.subr.bf16.mxu0 0
    %79 = vmatpush2.bf16.msra.mxu0 0
    %80 = vmatprep.subr.bf16.mxu0 0
    %81 = vmatpush2.bf16.msra.mxu0 0
    %82 = vmatprep.subr.bf16.mxu0 0
    %83 = vmatpush2.bf16.msra.mxu0 0
    %84 = vmatprep.subr.bf16.mxu0 0
    %85 = vmatpush2.bf16.msra.mxu0 0
    %86 = vmatprep.subr.bf16.mxu0 0
    %87 = vmatpush2.bf16.msra.mxu0 0
    %88 = vmatprep.mubr.bf16.mxu0 0
    %89 = vmatmul.mubr.bf16.gmra.mxu0 %v47
    %v90 = vpop.f32.mrf.mxu0
    %v91 = vadd.f32 0.0, %v90
    %v92 = vpop.f32.mrf.mxu0
    %v93 = vpop.f32.mrf.mxu0
    %v94 = vadd.f32 0.0, %v93
    %v95 = vpop.f32.mrf.mxu0
    %96 = vmatprep.mubr.bf16.mxu0 0
    %97 = vmatmul.mubr.bf16.gmra.mxu0 %v50
    %v98 = vpop.f32.mrf.mxu0
    %v99 = vadd.f32 0.0, %v98
    %v100 = vpop.f32.mrf.mxu0
    %v101 = vpop.f32.mrf.mxu0
    %v102 = vadd.f32 0.0, %v101
    %v103 = vpop.f32.mrf.mxu0
    %104 = vdwg.mxu0
    %v105 = vld [vmem:[#allocation2] sm:$0xf]
    %v106 = vld [vmem:[#allocation2 + $0x4] sm:$0xf]
    %v107 = vld [vmem:[#allocation2 + $0x8] sm:$0xf]
    %v108 = vld [vmem:[#allocation2 + $0xc] sm:$0xf]
    %v109 = vmax.f32 %v91, 0.0
    %v110 = vmax.f32 %v94, 0.0
    %v111 = vmax.f32 %v99, 0.0
    %v112 = vmax.f32 %v102, 0.0
    %v113 = vpack.c.bf16 %v110, %v109
    %v114 = vpack.c.bf16 %v112, %v111
    %v119 = vunpack.c.l.b16 %v105
    %v120 = vunpack.c.l.b16 %v106
    %v121 = vunpack.c.l.b16 %v107
    %v122 = vunpack.c.l.b16 %v108
    %v123 = vpack.c.b16 %v120, %v119
    %v124 = vpack.c.b16 %v122, %v121
    %vm125 = vcmask 261120
    %v127 = vsel %vm125, %v123, 0
    %v130 = vsel %vm125, %v124, 0
    %132 = vmatprep.subr.bf16.mxu0 0
    %133 = vmatpush1.bf16.msra.mxu0 0
    %134 = vmatprep.subr.bf16.mxu0 0
    %135 = vmatpush1.bf16.msra.mxu0 0
    %136 = vmatprep.subr.bf16.mxu0 0
    %137 = vmatpush1.bf16.msra.mxu0 0
    %138 = vmatprep.subr.bf16.mxu0 0
    %139 = vmatpush1.bf16.msra.mxu0 0
    %140 = vmatprep.subr.bf16.mxu0 0
    %141 = vmatpush1.bf16.msra.mxu0 0
    %142 = vmatprep.subr.bf16.mxu0 0
    %143 = vmatpush1.bf16.msra.mxu0 0
    %144 = vmatprep.subr.bf16.mxu0 0
    %145 = vmatpush1.bf16.msra.mxu0 %v114
    %146 = vmatprep.subr.bf16.mxu0 0
    %147 = vmatpush1.bf16.msra.mxu0 %v113
    %148 = vmatprep.subr.bf16.mxu0 0
    %149 = vmatpush2.bf16.msra.mxu0 0
    %150 = vmatprep.subr.bf16.mxu0 0
    %151 = vmatpush2.bf16.msra.mxu0 0
    %152 = vmatprep.subr.bf16.mxu0 0
    %153 = vmatpush2.bf16.msra.mxu0 0
    %154 = vmatprep.subr.bf16.mxu0 0
    %155 = vmatpush2.bf16.msra.mxu0 0
    %156 = vmatprep.subr.bf16.mxu0 0
    %157 = vmatpush2.bf16.msra.mxu0 0
    %158 = vmatprep.subr.bf16.mxu0 0
    %159 = vmatpush2.bf16.msra.mxu0 0
    %160 = vmatprep.subr.bf16.mxu0 0
    %161 = vmatpush2.bf16.msra.mxu0 0
    %162 = vmatprep.subr.bf16.mxu0 0
    %163 = vmatpush2.bf16.msra.mxu0 0
    %164 = vmatprep.mubr.bf16.mxu0 0
    %165 = vmatmul.mubr.bf16.gmra.mxu0 %v127
    %v166 = vpop.f32.mrf.mxu0
    %v167 = vadd.f32 0.0, %v166
    %v168 = vpop.f32.mrf.mxu0
    %v169 = vpop.f32.mrf.mxu0
    %v170 = vadd.f32 0.0, %v169
    %v171 = vpop.f32.mrf.mxu0
    %172 = vmatprep.mubr.bf16.mxu0 0
    %173 = vmatmul.mubr.bf16.gmra.mxu0 %v130
    %v174 = vpop.f32.mrf.mxu0
    %v175 = vadd.f32 0.0, %v174
    %v176 = vpop.f32.mrf.mxu0
    %v177 = vpop.f32.mrf.mxu0
    %v178 = vadd.f32 0.0, %v177
    %v179 = vpop.f32.mrf.mxu0
    %180 = vdwg.mxu0
    %s181 = scalar_lea.vmem [#allocation2], 16
    %v182 = vld [vmem:[%s181] sm:$0xf]
    %v183 = vld [vmem:[%s181 + $0x4] sm:$0xf]
    %v184 = vld [vmem:[%s181 + $0x8] sm:$0xf]
    %v185 = vld [vmem:[%s181 + $0xc] sm:$0xf]
    %v186 = vmax.f32 %v167, 0.0
    %v187 = vmax.f32 %v170, 0.0
    %v188 = vmax.f32 %v175, 0.0
    %v189 = vmax.f32 %v178, 0.0
    %v190 = vpack.c.bf16 %v187, %v186
    %v191 = vpack.c.bf16 %v189, %v188
    %v196 = vunpack.c.l.b16 %v182
    %v197 = vunpack.c.l.b16 %v183
    %v198 = vunpack.c.l.b16 %v184
    %v199 = vunpack.c.l.b16 %v185
    %v200 = vpack.c.b16 %v197, %v196
    %v201 = vpack.c.b16 %v199, %v198
    %v203 = vsel %vm125, %v200, 0
    %v206 = vsel %vm125, %v201, 0
    %208 = vmatprep.subr.bf16.mxu0 0
    %209 = vmatpush1.bf16.msra.mxu0 0
    %210 = vmatprep.subr.bf16.mxu0 0
    %211 = vmatpush1.bf16.msra.mxu0 0
    %212 = vmatprep.subr.bf16.mxu0 0
    %213 = vmatpush1.bf16.msra.mxu0 0
    %214 = vmatprep.subr.bf16.mxu0 0
    %215 = vmatpush1.bf16.msra.mxu0 0
    %216 = vmatprep.subr.bf16.mxu0 0
    %217 = vmatpush1.bf16.msra.mxu0 0
    %218 = vmatprep.subr.bf16.mxu0 0
    %219 = vmatpush1.bf16.msra.mxu0 0
    %220 = vmatprep.subr.bf16.mxu0 0
    %221 = vmatpush1.bf16.msra.mxu0 %v191
    %222 = vmatprep.subr.bf16.mxu0 0
    %223 = vmatpush1.bf16.msra.mxu0 %v190
    %224 = vmatprep.subr.bf16.mxu0 0
    %225 = vmatpush2.bf16.msra.mxu0 0
    %226 = vmatprep.subr.bf16.mxu0 0
    %227 = vmatpush2.bf16.msra.mxu0 0
    %228 = vmatprep.subr.bf16.mxu0 0
    %229 = vmatpush2.bf16.msra.mxu0 0
    %230 = vmatprep.subr.bf16.mxu0 0
    %231 = vmatpush2.bf16.msra.mxu0 0
    %232 = vmatprep.subr.bf16.mxu0 0
    %233 = vmatpush2.bf16.msra.mxu0 0
    %234 = vmatprep.subr.bf16.mxu0 0
    %235 = vmatpush2.bf16.msra.mxu0 0
    %236 = vmatprep.subr.bf16.mxu0 0
    %237 = vmatpush2.bf16.msra.mxu0 0
    %238 = vmatprep.subr.bf16.mxu0 0
    %239 = vmatpush2.bf16.msra.mxu0 0
    %240 = vmatprep.mubr.bf16.mxu0 0
    %241 = vmatmul.mubr.bf16.gmra.mxu0 %v203
    %v242 = vpop.f32.mrf.mxu0
    %v243 = vadd.f32 0.0, %v242
    %v244 = vpop.f32.mrf.mxu0
    %v245 = vpop.f32.mrf.mxu0
    %v246 = vadd.f32 0.0, %v245
    %v247 = vpop.f32.mrf.mxu0
    %248 = vmatprep.mubr.bf16.mxu0 0
    %249 = vmatmul.mubr.bf16.gmra.mxu0 %v206
    %v250 = vpop.f32.mrf.mxu0
    %v251 = vadd.f32 0.0, %v250
    %v252 = vpop.f32.mrf.mxu0
    %v253 = vpop.f32.mrf.mxu0
    %v254 = vadd.f32 0.0, %v253
    %v255 = vpop.f32.mrf.mxu0
    %256 = vdwg.mxu0
    %s257 = scalar_lea.vmem [#allocation2], 32
    %v258 = vld [vmem:[%s257] sm:$0xf]
    %v259 = vld [vmem:[%s257 + $0x4] sm:$0xf]
    %v260 = vld [vmem:[%s257 + $0x8] sm:$0xf]
    %v261 = vld [vmem:[%s257 + $0xc] sm:$0xf]
    %v262 = vmax.f32 %v243, 0.0
    %v263 = vmax.f32 %v246, 0.0
    %v264 = vmax.f32 %v251, 0.0
    %v265 = vmax.f32 %v254, 0.0
    %v266 = vpack.c.bf16 %v263, %v262
    %v267 = vpack.c.bf16 %v265, %v264
    %v272 = vunpack.c.l.b16 %v258
    %v273 = vunpack.c.l.b16 %v259
    %v274 = vunpack.c.l.b16 %v260
    %v275 = vunpack.c.l.b16 %v261
    %v276 = vpack.c.b16 %v273, %v272
    %v277 = vpack.c.b16 %v275, %v274
    %v279 = vsel %vm125, %v276, 0
    %v282 = vsel %vm125, %v277, 0
    %284 = vmatprep.subr.bf16.mxu0 0
    %285 = vmatpush1.bf16.msra.mxu0 0
    %286 = vmatprep.subr.bf16.mxu0 0
    %287 = vmatpush1.bf16.msra.mxu0 0
    %288 = vmatprep.subr.bf16.mxu0 0
    %289 = vmatpush1.bf16.msra.mxu0 0
    %290 = vmatprep.subr.bf16.mxu0 0
    %291 = vmatpush1.bf16.msra.mxu0 0
    %292 = vmatprep.subr.bf16.mxu0 0
    %293 = vmatpush1.bf16.msra.mxu0 0
    %294 = vmatprep.subr.bf16.mxu0 0
    %295 = vmatpush1.bf16.msra.mxu0 0
    %296 = vmatprep.subr.bf16.mxu0 0
    %297 = vmatpush1.bf16.msra.mxu0 %v267
    %298 = vmatprep.subr.bf16.mxu0 0
    %299 = vmatpush1.bf16.msra.mxu0 %v266
    %300 = vmatprep.subr.bf16.mxu0 0
    %301 = vmatpush2.bf16.msra.mxu0 0
    %302 = vmatprep.subr.bf16.mxu0 0
    %303 = vmatpush2.bf16.msra.mxu0 0
    %304 = vmatprep.subr.bf16.mxu0 0
    %305 = vmatpush2.bf16.msra.mxu0 0
    %306 = vmatprep.subr.bf16.mxu0 0
    %307 = vmatpush2.bf16.msra.mxu0 0
    %308 = vmatprep.subr.bf16.mxu0 0
    %309 = vmatpush2.bf16.msra.mxu0 0
    %310 = vmatprep.subr.bf16.mxu0 0
    %311 = vmatpush2.bf16.msra.mxu0 0
    %312 = vmatprep.subr.bf16.mxu0 0
    %313 = vmatpush2.bf16.msra.mxu0 0
    %314 = vmatprep.subr.bf16.mxu0 0
    %315 = vmatpush2.bf16.msra.mxu0 0
    %316 = vmatprep.mubr.bf16.mxu0 0
    %317 = vmatmul.mubr.bf16.gmra.mxu0 %v279
    %v318 = vpop.f32.mrf.mxu0
    %v319 = vadd.f32 0.0, %v318
    %v320 = vpop.f32.mrf.mxu0
    %v321 = vpop.f32.mrf.mxu0
    %v322 = vadd.f32 0.0, %v321
    %v323 = vpop.f32.mrf.mxu0
    %324 = vmatprep.mubr.bf16.mxu0 0
    %325 = vmatmul.mubr.bf16.gmra.mxu0 %v282
    %v326 = vpop.f32.mrf.mxu0
    %v327 = vadd.f32 0.0, %v326
    %v328 = vpop.f32.mrf.mxu0
    %v329 = vpop.f32.mrf.mxu0
    %v330 = vadd.f32 0.0, %v329
    %v331 = vpop.f32.mrf.mxu0
    %332 = vdwg.mxu0
    %s333 = scalar_lea.vmem [#allocation2], 48
    %v334 = vld [vmem:[%s333] sm:$0xf]
    %v335 = vld [vmem:[%s333 + $0x4] sm:$0xf]
    %v336 = vld [vmem:[%s333 + $0x8] sm:$0xf]
    %v337 = vld [vmem:[%s333 + $0xc] sm:$0xf]
    %v338 = vmax.f32 %v319, 0.0
    %v339 = vmax.f32 %v322, 0.0
    %v340 = vmax.f32 %v327, 0.0
    %v341 = vmax.f32 %v330, 0.0
    %v342 = vpack.c.bf16 %v339, %v338
    %v343 = vpack.c.bf16 %v341, %v340
    %v348 = vunpack.c.l.b16 %v334
    %v349 = vunpack.c.l.b16 %v335
    %v350 = vunpack.c.l.b16 %v336
    %v351 = vunpack.c.l.b16 %v337
    %v352 = vpack.c.b16 %v349, %v348
    %v353 = vpack.c.b16 %v351, %v350
    %v355 = vsel %vm125, %v352, 0
    %v358 = vsel %vm125, %v353, 0
    %360 = vmatprep.subr.bf16.mxu0 0
    %361 = vmatpush1.bf16.msra.mxu0 0
    %362 = vmatprep.subr.bf16.mxu0 0
    %363 = vmatpush1.bf16.msra.mxu0 0
    %364 = vmatprep.subr.bf16.mxu0 0
    %365 = vmatpush1.bf16.msra.mxu0 0
    %366 = vmatprep.subr.bf16.mxu0 0
    %367 = vmatpush1.bf16.msra.mxu0 0
    %368 = vmatprep.subr.bf16.mxu0 0
    %369 = vmatpush1.bf16.msra.mxu0 0
    %370 = vmatprep.subr.bf16.mxu0 0
    %371 = vmatpush1.bf16.msra.mxu0 0
    %372 = vmatprep.subr.bf16.mxu0 0
    %373 = vmatpush1.bf16.msra.mxu0 %v343
    %374 = vmatprep.subr.bf16.mxu0 0
    %375 = vmatpush1.bf16.msra.mxu0 %v342
    %376 = vmatprep.subr.bf16.mxu0 0
    %377 = vmatpush2.bf16.msra.mxu0 0
    %378 = vmatprep.subr.bf16.mxu0 0
    %379 = vmatpush2.bf16.msra.mxu0 0
    %380 = vmatprep.subr.bf16.mxu0 0
    %381 = vmatpush2.bf16.msra.mxu0 0
    %382 = vmatprep.subr.bf16.mxu0 0
    %383 = vmatpush2.bf16.msra.mxu0 0
    %384 = vmatprep.subr.bf16.mxu0 0
    %385 = vmatpush2.bf16.msra.mxu0 0
    %386 = vmatprep.subr.bf16.mxu0 0
    %387 = vmatpush2.bf16.msra.mxu0 0
    %388 = vmatprep.subr.bf16.mxu0 0
    %389 = vmatpush2.bf16.msra.mxu0 0
    %390 = vmatprep.subr.bf16.mxu0 0
    %391 = vmatpush2.bf16.msra.mxu0 0
    %392 = vmatprep.mubr.bf16.mxu0 0
    %393 = vmatmul.mubr.bf16.gmra.mxu0 %v355
    %v394 = vpop.f32.mrf.mxu0
    %v395 = vadd.f32 0.0, %v394
    %v396 = vpop.f32.mrf.mxu0
    %v397 = vpop.f32.mrf.mxu0
    %v398 = vadd.f32 0.0, %v397
    %v399 = vpop.f32.mrf.mxu0
    %400 = vmatprep.mubr.bf16.mxu0 0
    %401 = vmatmul.mubr.bf16.gmra.mxu0 %v358
    %v402 = vpop.f32.mrf.mxu0
    %v403 = vadd.f32 0.0, %v402
    %v404 = vpop.f32.mrf.mxu0
    %v405 = vpop.f32.mrf.mxu0
    %v406 = vadd.f32 0.0, %v405
    %v407 = vpop.f32.mrf.mxu0
    %408 = vdwg.mxu0
    %s409 = scalar_lea.vmem [#allocation2], 64
    %v410 = vld [vmem:[%s409] sm:$0xf]
    %v411 = vld [vmem:[%s409 + $0x4] sm:$0xf]
    %v412 = vld [vmem:[%s409 + $0x8] sm:$0xf]
    %v413 = vld [vmem:[%s409 + $0xc] sm:$0xf]
    %v414 = vmax.f32 %v395, 0.0
    %v415 = vmax.f32 %v398, 0.0
    %v416 = vmax.f32 %v403, 0.0
    %v417 = vmax.f32 %v406, 0.0
    %v418 = vpack.c.bf16 %v415, %v414
    %v419 = vpack.c.bf16 %v417, %v416
    %v424 = vunpack.c.l.b16 %v410
    %v425 = vunpack.c.l.b16 %v411
    %v426 = vunpack.c.l.b16 %v412
    %v427 = vunpack.c.l.b16 %v413
    %v428 = vpack.c.b16 %v425, %v424
    %v429 = vpack.c.b16 %v427, %v426
    %v431 = vsel %vm125, %v428, 0
    %v434 = vsel %vm125, %v429, 0
    %436 = vmatprep.subr.bf16.mxu0 0
    %437 = vmatpush1.bf16.msra.mxu0 0
    %438 = vmatprep.subr.bf16.mxu0 0
    %439 = vmatpush1.bf16.msra.mxu0 0
    %440 = vmatprep.subr.bf16.mxu0 0
    %441 = vmatpush1.bf16.msra.mxu0 0
    %442 = vmatprep.subr.bf16.mxu0 0
    %443 = vmatpush1.bf16.msra.mxu0 0
    %444 = vmatprep.subr.bf16.mxu0 0
    %445 = vmatpush1.bf16.msra.mxu0 0
    %446 = vmatprep.subr.bf16.mxu0 0
    %447 = vmatpush1.bf16.msra.mxu0 0
    %448 = vmatprep.subr.bf16.mxu0 0
    %449 = vmatpush1.bf16.msra.mxu0 %v419
    %450 = vmatprep.subr.bf16.mxu0 0
    %451 = vmatpush1.bf16.msra.mxu0 %v418
    %452 = vmatprep.subr.bf16.mxu0 0
    %453 = vmatpush2.bf16.msra.mxu0 0
    %454 = vmatprep.subr.bf16.mxu0 0
    %455 = vmatpush2.bf16.msra.mxu0 0
    %456 = vmatprep.subr.bf16.mxu0 0
    %457 = vmatpush2.bf16.msra.mxu0 0
    %458 = vmatprep.subr.bf16.mxu0 0
    %459 = vmatpush2.bf16.msra.mxu0 0
    %460 = vmatprep.subr.bf16.mxu0 0
    %461 = vmatpush2.bf16.msra.mxu0 0
    %462 = vmatprep.subr.bf16.mxu0 0
    %463 = vmatpush2.bf16.msra.mxu0 0
    %464 = vmatprep.subr.bf16.mxu0 0
    %465 = vmatpush2.bf16.msra.mxu0 0
    %466 = vmatprep.subr.bf16.mxu0 0
    %467 = vmatpush2.bf16.msra.mxu0 0
    %468 = vmatprep.mubr.bf16.mxu0 0
    %469 = vmatmul.mubr.bf16.gmra.mxu0 %v431
    %v470 = vpop.f32.mrf.mxu0
    %v471 = vadd.f32 0.0, %v470
    %v472 = vpop.f32.mrf.mxu0
    %v473 = vpop.f32.mrf.mxu0
    %v474 = vpop.f32.mrf.mxu0
    %475 = vmatprep.mubr.bf16.mxu0 0
    %476 = vmatmul.mubr.bf16.gmra.mxu0 %v434
    %v477 = vpop.f32.mrf.mxu0
    %v478 = vpop.f32.mrf.mxu0
    %v479 = vpop.f32.mrf.mxu0
    %v480 = vpop.f32.mrf.mxu0
    %481 = vdwg.mxu0
    %482 = vst [vmem:[%s3] sm:$0x1] %v471
    // Predicated region
    $region18: #{_lambda_.1} parent=1 // pred_check
      _
    $region19: #{_lambda_.1} parent=1 // pred_check_branch
      %484 = sbr.rel (0) target = $region21
    $region20: #{_lambda_.1} parent=1 // pred_region
      _
    $region21: #{_lambda_.1} parent=1 // pred_fallthru
      _
    // Predicated region
    $region22: #{_lambda_.1} parent=1 // pred_check
      _
    $region23: #{_lambda_.1} parent=1 // pred_check_branch
      %486 = sbr.rel (0) target = $region25
    $region24: #{_lambda_.1} parent=1 // pred_region
      _
    $region25: #{_lambda_.1} parent=1 // pred_fallthru
      _
    %487 = vsyncpa [#allocation3], 1

</llo_original>
